<compile_context>
chip_gen: v5e
topology: v5e:2x2
jax: 0.10.0
libtpu: 0.0.40
codegen_flags: <defaults>
</compile_context>

<pallas_src>
import functools

import jax
import jax.numpy as jnp
from jax.experimental import pallas as pl
from jax.experimental.pallas import tpu as pltpu


def _round_up(x, m):
    return ((x + m - 1) // m) * m


def mlp_heads_kernel(x_ref, w1_ref, b1_ref, w2_ref, b2_ref, o_ref):
    # Cast the streamed f32 activations to bf16 inside the kernel (saves the
    # wrapper-side read+write pre-pass over x in HBM).
    x_bf = x_ref[...].astype(jnp.bfloat16)
    # First layer for every head, fused: (TB, F) @ (F, out_dim*64) -> f32 accum.
    h = jnp.dot(x_bf, w1_ref[...], preferred_element_type=jnp.float32)
    h = jnp.maximum(h + b1_ref[...], 0.0)
    # Second layer: block-diagonal (out_dim*64, out_dim) -> compact (TB, out_dim)
    # result; only the useful columns are ever written back to HBM.
    out = jnp.dot(h.astype(w2_ref.dtype), w2_ref[...],
                  preferred_element_type=jnp.float32) + b2_ref[...]
    o_ref[...] = out.astype(o_ref.dtype)


def _vmem_capacity_bytes():
    try:
        return int(pltpu.get_tpu_info().vmem_capacity_bytes)
    except Exception:
        return 64 * 1024 * 1024  # conservative default (v7x per-TC VMEM)


def _derive_tb(F, H, out_dim, x_bytes, weight_buffers):
    """Largest batch tile fitting the VMEM budget (multiple of 16, <= 512)."""
    target = int(0.8 * _vmem_capacity_bytes()) - (4 << 20)  # Mosaic headroom
    resident = weight_buffers * (F * H * 2 + H * out_dim * 2 + H * 4 + out_dim * 4)
    per_row = (2 * F * x_bytes        # streamed x (double-buffered)
               + 2 * out_dim * 4      # streamed out (double-buffered)
               + F * 2                # in-kernel bf16 copy of x
               + H * 6                # hidden activations, f32 + bf16
               + out_dim * 4)         # second-matmul f32 result
    tb = (target - resident) // max(per_row, 1)
    return int(max(16, min(512, (tb // 16) * 16)))


@functools.partial(jax.jit,
                   static_argnames=("out_dim", "tb", "single_buffer_weights"))
def _mlp_layer_call(x, w1_bf, b1_f32, w2_bf, b2_f32, *, out_dim, tb,
                    single_buffer_weights):
    """x: (B, F) f32; w1_bf: (F, out_dim*64) bf16; b1_f32: (1, out_dim*64) f32;
    w2_bf: (out_dim*64, out_dim) block-diagonal bf16; b2_f32: (1, out_dim) f32.
    Returns (B, out_dim) in x.dtype."""
    B, F = x.shape
    H = w1_bf.shape[1]                 # out_dim * hidden
    x_bytes = jnp.dtype(x.dtype).itemsize
    weight_bufs = 1 if single_buffer_weights else 2

    if tb is None:
        tb = _derive_tb(F, H, out_dim, x_bytes, weight_bufs)
    TB = _round_up(max(int(tb), 16), 16)   # bf16 packs 16 rows per vreg
    TB = min(TB, _round_up(B, 8))          # don't over-pad small batches
    B_pad = _round_up(B, TB)
    if B_pad != B:
        x = jnp.pad(x, ((0, B_pad - B), (0, 0)))  # garbage rows sliced off below

    # Resident weights/biases: constant index_map -> DMA'd once. Buffered(1)
    # keeps a single VMEM copy (default double-buffering would hold two).
    if single_buffer_weights:
        def _resident(shape):
            return pl.BlockSpec(shape, lambda i: (0, 0),
                                pipeline_mode=pl.Buffered(1))
    else:
        def _resident(shape):
            return pl.BlockSpec(shape, lambda i: (0, 0))

    # VMEM accounting: resident weights/biases + double-buffered x/out streams
    # + in-kernel temporaries, plus headroom for Mosaic internal scratch.
    vmem_bytes = (weight_bufs * (F * H * 2 + H * out_dim * 2 + H * 4 + out_dim * 4)
                  + 2 * TB * F * x_bytes
                  + 2 * TB * out_dim * 4
                  + TB * (F * 2 + H * 6 + out_dim * 4))
    vmem_limit = int(min(vmem_bytes + (4 << 20), 0.8 * _vmem_capacity_bytes()))
    vmem_limit = max(vmem_limit, 16 << 20)

    grid = (B_pad // TB,)
    out = pl.pallas_call(
        mlp_heads_kernel,
        out_shape=jax.ShapeDtypeStruct((B_pad, out_dim), x.dtype),
        grid_spec=pl.GridSpec(
            grid=grid,
            in_specs=[
                pl.BlockSpec((TB, F), lambda i: (i, 0)),  # streamed over batch
                _resident((F, H)),                        # W1 (bf16, resident)
                _resident((1, H)),                        # b1 (f32, resident)
                _resident((H, out_dim)),                  # W2 block-diag (bf16)
                _resident((1, out_dim)),                  # b2 (f32)
            ],
            out_specs=pl.BlockSpec((TB, out_dim), lambda i: (i, 0)),
        ),
        compiler_params=pltpu.CompilerParams(
            dimension_semantics=("parallel",),  # batch tiles split across TCs
            vmem_limit_bytes=vmem_limit,
        ),
    )(x, w1_bf, b1_f32, w2_bf, b2_f32)

    if B_pad != B:
        out = out[:B]                 # drop padded-batch garbage rows
    return out


def mlp_layer_forward(x, w1_bf, b1, w2_bf, b2, out_dim, tb=None):
    """Forward pass of MLP_layer over packed, pre-cast params (see pack_params)."""
    try:
        return _mlp_layer_call(x, w1_bf, b1, w2_bf, b2, out_dim=out_dim, tb=tb,
                               single_buffer_weights=True)
    except Exception:
        # Fallback for Pallas builds without BlockSpec pipeline_mode /
        # single-buffered resident blocks (default double-buffered weights).
        return _mlp_layer_call(x, w1_bf, b1, w2_bf, b2, out_dim=out_dim, tb=tb,
                               single_buffer_weights=False)


def pack_params(per_head, hidden=64):
    """One-time packing + bf16 cast of per-head params for the fused kernel.

    Done OUTSIDE the per-call path so the weight cast never re-reads HBM on
    each forward.
    """
    out_dim = len(per_head)
    w1_packed = jnp.concatenate([w1 for (w1, _, _, _) in per_head], axis=1)
    b1_packed = jnp.concatenate([b1 for (_, b1, _, _) in per_head])[None, :]
    # Block-diagonal second layer: output column h only sees head h's hidden block.
    w2_block = jnp.zeros((out_dim * hidden, out_dim), jnp.float32)
    for h, (_, _, w2, _) in enumerate(per_head):
        w2_block = w2_block.at[h * hidden:(h + 1) * hidden, h].set(w2)
    b2_packed = jnp.concatenate([b2 for (_, _, _, b2) in per_head])[None, :]
    return (w1_packed.astype(jnp.bfloat16), b1_packed.astype(jnp.float32),
            w2_block.astype(jnp.bfloat16), b2_packed.astype(jnp.float32))


def init_params(key, num_features, out_dim, hidden=64):
    """Per-head params emulating PyTorch Linear default init (uniform
    +-1/sqrt(fan_in)); weights are rounded through bf16 once so the kernel and
    the f32 reference share identical weight values."""
    keys = jax.random.split(key, out_dim * 4)
    lim1 = 1.0 / float(num_features) ** 0.5
    lim2 = 1.0 / float(hidden) ** 0.5
    per_head = []
    for h in range(out_dim):
        k1, k2, k3, k4 = keys[4 * h: 4 * h + 4]
        # PyTorch Linear weight is (out, in); stored transposed as (in, out).
        w1 = jax.random.uniform(k1, (num_features, hidden), jnp.float32, -lim1, lim1)
        b1 = jax.random.uniform(k2, (hidden,), jnp.float32, -lim1, lim1)
        w2 = jax.random.uniform(k3, (hidden,), jnp.float32, -lim2, lim2)
        b2 = jax.random.uniform(k4, (1,), jnp.float32, -lim2, lim2)
        w1 = w1.astype(jnp.bfloat16).astype(jnp.float32)
        w2 = w2.astype(jnp.bfloat16).astype(jnp.float32)
        per_head.append((w1, b1, w2, b2))
    return pack_params(per_head, hidden=hidden), per_head


def reference_forward(x, per_head):
    outs = []
    for (w1, b1, w2, b2) in per_head:
        h = jnp.maximum(x @ w1 + b1, 0.0)
        outs.append(h @ w2[:, None] + b2)     # (B, 1)
    return jnp.concatenate(outs, axis=1)      # (B, out_dim)


if __name__ == "__main__":
    key = jax.random.PRNGKey(0)
    k_x, k_p = jax.random.split(key)

    B = 32             # batch: two 16-row tiles to exercise the pipeline
    num_features = 32  # base_model.num_features (synthetic base_output features)
    out_dim = 4
    hidden = 64

    x = jax.random.normal(k_x, (B, num_features), jnp.float32)
    (w1_bf, b1, w2_bf, b2), per_head = init_params(k_p, num_features, out_dim, hidden)

    out = mlp_layer_forward(x, w1_bf, b1, w2_bf, b2, out_dim=out_dim, tb=16)
    out = jax.block_until_ready(out)

    # f32 reference with the same (bf16-rounded) weights; remaining error is
    # only the in-kernel bf16 activation cast (~0.5% relative).
    ref = reference_forward(x, per_head)
    assert out.shape == (B, out_dim)
    assert jnp.allclose(out, ref, atol=5e-2, rtol=5e-2), "mismatch vs reference"

    print("KERNEL_OK")
</pallas_src>

<mosaic_0001>
module attributes {stable_mosaic.version = 11 : i64} {
  func.func @mlp_heads_kernel(%arg0: i32, %arg1: memref<16x32xf32, #tpu.memory_space<vmem>>, %arg2: memref<32x256xbf16, #tpu.memory_space<vmem>>, %arg3: memref<1x256xf32, #tpu.memory_space<vmem>>, %arg4: memref<256x4xbf16, #tpu.memory_space<vmem>>, %arg5: memref<1x4xf32, #tpu.memory_space<vmem>>, %arg6: memref<16x4xf32, #tpu.memory_space<vmem>>) attributes {dimension_semantics = [#tpu.dimension_semantics<parallel>], iteration_bounds = array<i64: 2>, scalar_prefetch = 0 : i64, scratch_operands = 0 : i64, tpu.core_type = #tpu.core_type<tc>, window_params = [{transform_indices = @transform_0, window_bounds = array<i64: 16, 32>}, {pipeline_mode = #tpu.pipeline_mode<synchronous>, transform_indices = @transform_1, window_bounds = array<i64: 32, 256>}, {pipeline_mode = #tpu.pipeline_mode<synchronous>, transform_indices = @transform_2, window_bounds = array<i64: 1, 256>}, {pipeline_mode = #tpu.pipeline_mode<synchronous>, transform_indices = @transform_3, window_bounds = array<i64: 256, 4>}, {pipeline_mode = #tpu.pipeline_mode<synchronous>, transform_indices = @transform_4, window_bounds = array<i64: 1, 4>}, {transform_indices = @transform_5, window_bounds = array<i64: 16, 4>}]} {
    %c0 = arith.constant 0 : index
    %c0_0 = arith.constant 0 : index
    %0 = vector.load %arg1[%c0, %c0_0] : memref<16x32xf32, #tpu.memory_space<vmem>>, vector<16x32xf32>
    %1 = arith.truncf %0 : vector<16x32xf32> to vector<16x32xbf16>
    %c0_1 = arith.constant 0 : index
    %c0_2 = arith.constant 0 : index
    %2 = vector.load %arg2[%c0_1, %c0_2] : memref<32x256xbf16, #tpu.memory_space<vmem>>, vector<32x256xbf16>
    %cst = arith.constant dense<0.000000e+00> : vector<16x256xf32>
    %3 = tpu.matmul %1, %2, %cst {dimension_numbers = #tpu.dot_dimension_numbers<[1], [0], [0], [1], [0, 0, 1, 1], [], []>} : vector<16x32xbf16>, vector<32x256xbf16>, vector<16x256xf32> -> vector<16x256xf32>
    %c0_3 = arith.constant 0 : index
    %c0_4 = arith.constant 0 : index
    %4 = vector.load %arg3[%c0_3, %c0_4] : memref<1x256xf32, #tpu.memory_space<vmem>>, vector<1x256xf32>
    %5 = vector.broadcast %4 : vector<1x256xf32> to vector<16x256xf32>
    %6 = arith.addf %3, %5 : vector<16x256xf32>
    %cst_5 = arith.constant 0.000000e+00 : f32
    %7 = vector.broadcast %cst_5 : f32 to vector<16x256xf32>
    %8 = arith.maximumf %6, %7 : vector<16x256xf32>
    %9 = arith.truncf %8 : vector<16x256xf32> to vector<16x256xbf16>
    %c0_6 = arith.constant 0 : index
    %c0_7 = arith.constant 0 : index
    %10 = vector.load %arg4[%c0_6, %c0_7] : memref<256x4xbf16, #tpu.memory_space<vmem>>, vector<256x4xbf16>
    %cst_8 = arith.constant dense<0.000000e+00> : vector<16x4xf32>
    %11 = tpu.matmul %9, %10, %cst_8 {dimension_numbers = #tpu.dot_dimension_numbers<[1], [0], [0], [1], [0, 0, 1, 1], [], []>} : vector<16x256xbf16>, vector<256x4xbf16>, vector<16x4xf32> -> vector<16x4xf32>
    %c0_9 = arith.constant 0 : index
    %c0_10 = arith.constant 0 : index
    %12 = vector.load %arg5[%c0_9, %c0_10] : memref<1x4xf32, #tpu.memory_space<vmem>>, vector<1x4xf32>
    %13 = vector.broadcast %12 : vector<1x4xf32> to vector<16x4xf32>
    %14 = arith.addf %11, %13 : vector<16x4xf32>
    %c0_11 = arith.constant 0 : index
    %c0_12 = arith.constant 0 : index
    %15 = vector.load %arg6[%c0_11, %c0_12] : memref<16x4xf32, #tpu.memory_space<vmem>>, vector<16x4xf32>
    tpu.vector_store %arg6[%c0_11, %c0_12], %14 {strides = array<i32>} : memref<16x4xf32, #tpu.memory_space<vmem>>, vector<16x4xf32>,
    return
  }
  func.func @transform_0(%arg0: i32) -> (i32, i32) {
    %c0_i32 = arith.constant 0 : i32
    %c0_i32_0 = arith.constant 0 : i32
    return %arg0, %c0_i32 : i32, i32
  }
  func.func @transform_1(%arg0: i32) -> (i32, i32) {
    %c0_i32 = arith.constant 0 : i32
    %c0_i32_0 = arith.constant 0 : i32
    %c0_i32_1 = arith.constant 0 : i32
    return %c0_i32, %c0_i32_0 : i32, i32
  }
  func.func @transform_2(%arg0: i32) -> (i32, i32) {
    %c0_i32 = arith.constant 0 : i32
    %c0_i32_0 = arith.constant 0 : i32
    %c0_i32_1 = arith.constant 0 : i32
    return %c0_i32, %c0_i32_0 : i32, i32
  }
  func.func @transform_3(%arg0: i32) -> (i32, i32) {
    %c0_i32 = arith.constant 0 : i32
    %c0_i32_0 = arith.constant 0 : i32
    %c0_i32_1 = arith.constant 0 : i32
    return %c0_i32, %c0_i32_0 : i32, i32
  }
  func.func @transform_4(%arg0: i32) -> (i32, i32) {
    %c0_i32 = arith.constant 0 : i32
    %c0_i32_0 = arith.constant 0 : i32
    %c0_i32_1 = arith.constant 0 : i32
    return %c0_i32, %c0_i32_0 : i32, i32
  }
  func.func @transform_5(%arg0: i32) -> (i32, i32) {
    %c0_i32 = arith.constant 0 : i32
    %c0_i32_0 = arith.constant 0 : i32
    return %arg0, %c0_i32 : i32, i32
  }
}

module attributes {stable_mosaic.version = 11 : i64} {
  func.func @mlp_heads_kernel(%arg0: i32, %arg1: memref<16x32xf32, #tpu.memory_space<vmem>>, %arg2: memref<32x256xbf16, #tpu.memory_space<vmem>>, %arg3: memref<1x256xf32, #tpu.memory_space<vmem>>, %arg4: memref<256x4xbf16, #tpu.memory_space<vmem>>, %arg5: memref<1x4xf32, #tpu.memory_space<vmem>>, %arg6: memref<16x4xf32, #tpu.memory_space<vmem>>) attributes {dimension_semantics = [#tpu.dimension_semantics<parallel>], iteration_bounds = array<i64: 2>, scalar_prefetch = 0 : i64, scratch_operands = 0 : i64, tpu.core_type = #tpu.core_type<tc>, window_params = [{transform_indices = @transform_0, window_bounds = array<i64: 16, 32>}, {pipeline_mode = #tpu.pipeline_mode<synchronous>, transform_indices = @transform_1, window_bounds = array<i64: 32, 256>}, {pipeline_mode = #tpu.pipeline_mode<synchronous>, transform_indices = @transform_2, window_bounds = array<i64: 1, 256>}, {pipeline_mode = #tpu.pipeline_mode<synchronous>, transform_indices = @transform_3, window_bounds = array<i64: 256, 4>}, {pipeline_mode = #tpu.pipeline_mode<synchronous>, transform_indices = @transform_4, window_bounds = array<i64: 1, 4>}, {transform_indices = @transform_5, window_bounds = array<i64: 16, 4>}]} {
    %c0 = arith.constant 0 : index
    %c0_0 = arith.constant 0 : index
    %0 = vector.load %arg1[%c0, %c0_0] : memref<16x32xf32, #tpu.memory_space<vmem>>, vector<16x32xf32>
    %1 = arith.truncf %0 : vector<16x32xf32> to vector<16x32xbf16>
    %c0_1 = arith.constant 0 : index
    %c0_2 = arith.constant 0 : index
    %2 = vector.load %arg2[%c0_1, %c0_2] : memref<32x256xbf16, #tpu.memory_space<vmem>>, vector<32x256xbf16>
    %cst = arith.constant dense<0.000000e+00> : vector<16x256xf32>
    %3 = tpu.matmul %1, %2, %cst {dimension_numbers = #tpu.dot_dimension_numbers<[1], [0], [0], [1], [0, 0, 1, 1], [], []>} : vector<16x32xbf16>, vector<32x256xbf16>, vector<16x256xf32> -> vector<16x256xf32>
    %c0_3 = arith.constant 0 : index
    %c0_4 = arith.constant 0 : index
    %4 = vector.load %arg3[%c0_3, %c0_4] : memref<1x256xf32, #tpu.memory_space<vmem>>, vector<1x256xf32>
    %5 = vector.broadcast %4 : vector<1x256xf32> to vector<16x256xf32>
    %6 = arith.addf %3, %5 : vector<16x256xf32>
    %cst_5 = arith.constant 0.000000e+00 : f32
    %7 = vector.broadcast %cst_5 : f32 to vector<16x256xf32>
    %8 = arith.maximumf %6, %7 : vector<16x256xf32>
    %9 = arith.truncf %8 : vector<16x256xf32> to vector<16x256xbf16>
    %c0_6 = arith.constant 0 : index
    %c0_7 = arith.constant 0 : index
    %10 = vector.load %arg4[%c0_6, %c0_7] : memref<256x4xbf16, #tpu.memory_space<vmem>>, vector<256x4xbf16>
    %cst_8 = arith.constant dense<0.000000e+00> : vector<16x4xf32>
    %11 = tpu.matmul %9, %10, %cst_8 {dimension_numbers = #tpu.dot_dimension_numbers<[1], [0], [0], [1], [0, 0, 1, 1], [], []>} : vector<16x256xbf16>, vector<256x4xbf16>, vector<16x4xf32> -> vector<16x4xf32>
    %c0_9 = arith.constant 0 : index
    %c0_10 = arith.constant 0 : index
    %12 = vector.load %arg5[%c0_9, %c0_10] : memref<1x4xf32, #tpu.memory_space<vmem>>, vector<1x4xf32>
    %13 = vector.broadcast %12 : vector<1x4xf32> to vector<16x4xf32>
    %14 = arith.addf %11, %13 : vector<16x4xf32>
    %c0_11 = arith.constant 0 : index
    %c0_12 = arith.constant 0 : index
    %15 = vector.load %arg6[%c0_11, %c0_12] : memref<16x4xf32, #tpu.memory_space<vmem>>, vector<16x4xf32>
    tpu.vector_store %arg6[%c0_11, %c0_12], %14 {strides = array<i32>} : memref<16x4xf32, #tpu.memory_space<vmem>>, vector<16x4xf32>,
    return
  }
  func.func @transform_0(%arg0: i32) -> (i32, i32) {
    %c0_i32 = arith.constant 0 : i32
    %c0_i32_0 = arith.constant 0 : i32
    return %arg0, %c0_i32 : i32, i32
  }
  func.func @transform_1(%arg0: i32) -> (i32, i32) {
    %c0_i32 = arith.constant 0 : i32
    %c0_i32_0 = arith.constant 0 : i32
    %c0_i32_1 = arith.constant 0 : i32
    return %c0_i32, %c0_i32_0 : i32, i32
  }
  func.func @transform_2(%arg0: i32) -> (i32, i32) {
    %c0_i32 = arith.constant 0 : i32
    %c0_i32_0 = arith.constant 0 : i32
    %c0_i32_1 = arith.constant 0 : i32
    return %c0_i32, %c0_i32_0 : i32, i32
  }
  func.func @transform_3(%arg0: i32) -> (i32, i32) {
    %c0_i32 = arith.constant 0 : i32
    %c0_i32_0 = arith.constant 0 : i32
    %c0_i32_1 = arith.constant 0 : i32
    return %c0_i32, %c0_i32_0 : i32, i32
  }
  func.func @transform_4(%arg0: i32) -> (i32, i32) {
    %c0_i32 = arith.constant 0 : i32
    %c0_i32_0 = arith.constant 0 : i32
    %c0_i32_1 = arith.constant 0 : i32
    return %c0_i32, %c0_i32_0 : i32, i32
  }
  func.func @transform_5(%arg0: i32) -> (i32, i32) {
    %c0_i32 = arith.constant 0 : i32
    %c0_i32_0 = arith.constant 0 : i32
    return %arg0, %c0_i32 : i32, i32
  }
}

</mosaic_0001>

<llo_original>
// kernel: _mlp_layer_call.1
$region0: #{_mlp_layer_call.1}
  #allocation0 [shape = 'u32[]', space=smem, size = 0x4, offset = 0x4, fixed_abs, tag = 'smem constant byte address 0x4 - core index']
  #allocation1 [shape = 'u32[72,128]{1,0:T(1,128)}', space=vmem, size = 0x9000, scoped, tag = 'internal scratch']
  %s0 = inlined_call_operand.vmem [shape: f32[32,32], index: 0, kind: input, shape index: {}]
  %s1 = inlined_call_operand.vmem [shape: bf16[32,256], index: 1, kind: input, shape index: {}]
  %s2 = inlined_call_operand.vmem [shape: f32[1,256], index: 2, kind: input, shape index: {}]
  %s3 = inlined_call_operand.vmem [shape: bf16[256,4], index: 3, kind: input, shape index: {}]
  %s4 = inlined_call_operand.vmem [shape: f32[1,4], index: 4, kind: input, shape index: {}]
  %s5 = inlined_call_operand.vmem [shape: f32[32,4], index: 5, kind: output, shape index: {}]
  %s6 = sld [smem:[#allocation0]]
  $region53: #{_mlp_layer_call.1} parent=0
    _
  %s8 = ssub.s32 1, %s6
  %s9 = scalar_select 0, %s8, %s6
  loop: start=0, step=1, limit=4
  $region2: #{_mlp_layer_call.1} parent=0 // loop_pre_header
    _
  $region3: #{_mlp_layer_call.1} parent=0 // loop_header
    %s11 = sphi 0, %s15
    %p12 = scmp.ge.s32.totalorder %s11, 4
    %s21 = sphi 0, %s23
    %s24 = sphi 0, %s21
    %s25 = sphi 0, %s24
    %s41 = sphi 0, %s25
    %s45 = sphi 0, %s45
    %s47 = sphi 0, %s45
    %s48 = sphi 0, %s47
    %s62 = sphi 0, %s48
    %s66 = sphi 0, %s66
    %s68 = sphi 0, %s66
    %s69 = sphi 0, %s68
    %s83 = sphi 0, %s69
    %s87 = sphi 0, %s87
    %s89 = sphi 0, %s87
    %s90 = sphi 0, %s89
    %s104 = sphi 0, %s90
    %s108 = sphi 0, %s108
    %s110 = sphi 0, %s108
    %s111 = sphi 0, %s110
    %s125 = sphi 0, %s111
    %s131 = sphi 0, %s133
    %s134 = sphi 0, %s131
    %s135 = sphi 0, %s134
    %s151 = sphi 0, %s135
  $region4: #{_mlp_layer_call.1} parent=0 // loop_header_branch
    %14 = sbr.rel (%p12) target = $region8
  $region5: #{_mlp_layer_call.1} parent=0 // loop_body
    %s16 = ssub.s32 %s11, 1
    %s17 = ssub.s32 %s11, 2
    %s18 = sadd.s32 %s11, 1
    %s19 = ssub.s32 %s11, %s18
    %p20 = scmp.eq.s32.totalorder %s19, 0
    %s22 = sadd.s32 %s21, 1
    %s23 = scalar_select %p20, %s21, %s22
    %p26 = pneg %p20
    %p27 = scmp.eq.s32.totalorder %s11, 1
    %p28 = por %p26, %p27
    %p29 = scmp.ne.s32.totalorder %s21, %s24
    %p30 = scmp.eq.s32.totalorder %s11, 0
    %p31 = por %p29, %p30
    %p32 = scmp.ne.s32.totalorder %s21, %s24
    %p33 = scmp.eq.s32.totalorder %s16, 1
    %p34 = por %p32, %p33
    %p35 = scmp.ne.s32.totalorder %s24, %s25
    %p36 = scmp.eq.s32.totalorder %s16, 0
    %p37 = por %p35, %p36
    %p38 = scmp.ne.s32.totalorder %s24, %s25
    %p39 = scmp.eq.s32.totalorder %s17, 1
    %p40 = por %p38, %p39
    %p42 = scmp.ne.s32.totalorder %s25, %s41
    %p43 = scmp.eq.s32.totalorder %s17, 0
    %p44 = por %p42, %p43
    %s46 = sadd.s32 %s45, 1
    %p49 = scmp.eq.s32.totalorder %s11, 1
    %p50 = scmp.ne.s32.totalorder %s45, %s47
    %p51 = scmp.eq.s32.totalorder %s11, 0
    %p52 = por %p50, %p51
    %p53 = scmp.ne.s32.totalorder %s45, %s47
    %p54 = scmp.eq.s32.totalorder %s16, 1
    %p55 = por %p53, %p54
    %p56 = scmp.ne.s32.totalorder %s47, %s48
    %p57 = scmp.eq.s32.totalorder %s16, 0
    %p58 = por %p56, %p57
    %p59 = scmp.ne.s32.totalorder %s47, %s48
    %p60 = scmp.eq.s32.totalorder %s17, 1
    %p61 = por %p59, %p60
    %p63 = scmp.ne.s32.totalorder %s48, %s62
    %p64 = scmp.eq.s32.totalorder %s17, 0
    %p65 = por %p63, %p64
    %s67 = sadd.s32 %s66, 1
    %p70 = scmp.eq.s32.totalorder %s11, 1
    %p71 = scmp.ne.s32.totalorder %s66, %s68
    %p72 = scmp.eq.s32.totalorder %s11, 0
    %p73 = por %p71, %p72
    %p74 = scmp.ne.s32.totalorder %s66, %s68
    %p75 = scmp.eq.s32.totalorder %s16, 1
    %p76 = por %p74, %p75
    %p77 = scmp.ne.s32.totalorder %s68, %s69
    %p78 = scmp.eq.s32.totalorder %s16, 0
    %p79 = por %p77, %p78
    %p80 = scmp.ne.s32.totalorder %s68, %s69
    %p81 = scmp.eq.s32.totalorder %s17, 1
    %p82 = por %p80, %p81
    %p84 = scmp.ne.s32.totalorder %s69, %s83
    %p85 = scmp.eq.s32.totalorder %s17, 0
    %p86 = por %p84, %p85
    %s88 = sadd.s32 %s87, 1
    %p91 = scmp.eq.s32.totalorder %s11, 1
    %p92 = scmp.ne.s32.totalorder %s87, %s89
    %p93 = scmp.eq.s32.totalorder %s11, 0
    %p94 = por %p92, %p93
    %p95 = scmp.ne.s32.totalorder %s87, %s89
    %p96 = scmp.eq.s32.totalorder %s16, 1
    %p97 = por %p95, %p96
    %p98 = scmp.ne.s32.totalorder %s89, %s90
    %p99 = scmp.eq.s32.totalorder %s16, 0
    %p100 = por %p98, %p99
    %p101 = scmp.ne.s32.totalorder %s89, %s90
    %p102 = scmp.eq.s32.totalorder %s17, 1
    %p103 = por %p101, %p102
    %p105 = scmp.ne.s32.totalorder %s90, %s104
    %p106 = scmp.eq.s32.totalorder %s17, 0
    %p107 = por %p105, %p106
    %s109 = sadd.s32 %s108, 1
    %p112 = scmp.eq.s32.totalorder %s11, 1
    %p113 = scmp.ne.s32.totalorder %s108, %s110
    %p114 = scmp.eq.s32.totalorder %s11, 0
    %p115 = por %p113, %p114
    %p116 = scmp.ne.s32.totalorder %s108, %s110
    %p117 = scmp.eq.s32.totalorder %s16, 1
    %p118 = por %p116, %p117
    %p119 = scmp.ne.s32.totalorder %s110, %s111
    %p120 = scmp.eq.s32.totalorder %s16, 0
    %p121 = por %p119, %p120
    %p122 = scmp.ne.s32.totalorder %s110, %s111
    %p123 = scmp.eq.s32.totalorder %s17, 1
    %p124 = por %p122, %p123
    %p126 = scmp.ne.s32.totalorder %s111, %s125
    %p127 = scmp.eq.s32.totalorder %s17, 0
    %p128 = por %p126, %p127
    %s129 = ssub.s32 %s11, %s18
    %p130 = scmp.eq.s32.totalorder %s129, 0
    %s132 = sadd.s32 %s131, 1
    %s133 = scalar_select %p130, %s131, %s132
    %p136 = pneg %p130
    %p137 = scmp.eq.s32.totalorder %s11, 1
    %p138 = por %p136, %p137
    %p139 = scmp.ne.s32.totalorder %s131, %s134
    %p140 = scmp.eq.s32.totalorder %s11, 0
    %p141 = por %p139, %p140
    %p142 = scmp.ne.s32.totalorder %s131, %s134
    %p143 = scmp.eq.s32.totalorder %s16, 1
    %p144 = por %p142, %p143
    %p145 = scmp.ne.s32.totalorder %s134, %s135
    %p146 = scmp.eq.s32.totalorder %s16, 0
    %p147 = por %p145, %p146
    %p148 = scmp.ne.s32.totalorder %s134, %s135
    %p149 = scmp.eq.s32.totalorder %s17, 1
    %p150 = por %p148, %p149
    %p152 = scmp.ne.s32.totalorder %s135, %s151
    %p153 = scmp.eq.s32.totalorder %s17, 0
    %p154 = por %p152, %p153
    %p155 = scmp.le.s32.totalorder 1, %s11
    %p156 = scmp.lt.s32.totalorder %s11, 3
    %p157 = pnand %p155, %p156
    %p158 = pneg %p157
    // Predicated region
    $region9: #{_mlp_layer_call.1} parent=5 // pred_check
      _
    $region10: #{_mlp_layer_call.1} parent=5 // pred_check_branch
      %160 = sbr.rel (%p157) target = $region12
    $region11: #{_mlp_layer_call.1} parent=5 // pred_region
      %s161 = ssub.s32 %s11, 1
      // Predicated region
      $region13: #{_mlp_layer_call.1} parent=11 // pred_check
        %p162 = pneg %p58
      $region14: #{_mlp_layer_call.1} parent=11 // pred_check_branch
        %164 = sbr.rel (%p162) target = $region16
      $region15: #{_mlp_layer_call.1} parent=11 // pred_region
        _
      $region16: #{_mlp_layer_call.1} parent=11 // pred_fallthru
        _
      // Predicated region
      $region17: #{_mlp_layer_call.1} parent=11 // pred_check
        %p165 = pneg %p79
      $region18: #{_mlp_layer_call.1} parent=11 // pred_check_branch
        %167 = sbr.rel (%p165) target = $region20
      $region19: #{_mlp_layer_call.1} parent=11 // pred_region
        _
      $region20: #{_mlp_layer_call.1} parent=11 // pred_fallthru
        _
      // Predicated region
      $region21: #{_mlp_layer_call.1} parent=11 // pred_check
        %p168 = pneg %p100
      $region22: #{_mlp_layer_call.1} parent=11 // pred_check_branch
        %170 = sbr.rel (%p168) target = $region24
      $region23: #{_mlp_layer_call.1} parent=11 // pred_region
        _
      $region24: #{_mlp_layer_call.1} parent=11 // pred_fallthru
        _
      // Predicated region
      $region25: #{_mlp_layer_call.1} parent=11 // pred_check
        %p171 = pneg %p121
      $region26: #{_mlp_layer_call.1} parent=11 // pred_check_branch
        %173 = sbr.rel (%p171) target = $region28
      $region27: #{_mlp_layer_call.1} parent=11 // pred_region
        _
      $region28: #{_mlp_layer_call.1} parent=11 // pred_fallthru
        _
    $region12: #{_mlp_layer_call.1} parent=5 // pred_fallthru
      _
    %p174 = scmp.lt.s32.totalorder %s11, 2
    // Predicated region
    $region29: #{_mlp_layer_call.1} parent=5 // pred_check
      %p175 = pneg %p174
    $region30: #{_mlp_layer_call.1} parent=5 // pred_check_branch
      %177 = sbr.rel (%p175) target = $region32
    $region31: #{_mlp_layer_call.1} parent=5 // pred_region
      // Predicated region
      $region33: #{_mlp_layer_call.1} parent=31 // pred_check
        %p178 = pneg %p31
      $region34: #{_mlp_layer_call.1} parent=31 // pred_check_branch
        %180 = sbr.rel (%p178) target = $region36
      $region35: #{_mlp_layer_call.1} parent=31 // pred_region
        %s181 = smul.u32 2, %s11
        %p182 = scmp.lt.s32.totalorder %s181, 3
        %s183 = scalar_select %p182, %s181, 3
        %s184 = smul.addr %s183, 8
        %s185 = scalar_lea.vmem %s0, %s184
        %s186 = smul.u32 2, %s11
      $region36: #{_mlp_layer_call.1} parent=31 // pred_fallthru
        _
    $region32: #{_mlp_layer_call.1} parent=5 // pred_fallthru
      _
    %p187 = scmp.le.s32.totalorder 1, %s11
    %p188 = scmp.lt.s32.totalorder %s11, 3
    %p189 = pnand %p187, %p188
    %p190 = pneg %p189
    // Predicated region
    $region37: #{_mlp_layer_call.1} parent=5 // pred_check
      _
    $region38: #{_mlp_layer_call.1} parent=5 // pred_check_branch
      %192 = sbr.rel (%p189) target = $region40
    $region39: #{_mlp_layer_call.1} parent=5 // pred_region
      %s193 = ssub.s32 %s11, 1
      %s194 = smul.u32 2, %s16
      %p195 = scmp.lt.s32.totalorder %s194, 3
      %s196 = scalar_select %p195, %s194, 3
      %s197 = smul.addr %s196, 8
      %s198 = scalar_lea.vmem %s0, %s197
      %p199 = pneg %p37
      %p200 = pneg %p34
      %p201 = pneg %p58
      %p202 = pneg %p55
      %p203 = pneg %p79
      %p204 = pneg %p76
      %p205 = pneg %p100
      %p206 = pneg %p97
      %p207 = pneg %p121
      %p208 = pneg %p118
      %p209 = pneg %p147
      %p210 = pneg %p144
      %s211 = smul.u32 2, %s16
      %p212 = scmp.lt.s32.totalorder %s211, 3
      %s213 = scalar_select %p212, %s211, 3
      %s214 = smul.addr %s213, 8
      %s215 = scalar_lea.vmem %s5, %s214
      %s216 = smul.u32 2, %s16
      %p217 = scmp.lt.s32.totalorder %s216, 3
      %s218 = scalar_select %p217, %s216, 3
      %s219 = smul.addr %s218, 8
      %s220 = scalar_lea.vmem %s0, %s219
      %s221 = smul.u32 2, %s16
      %s222 = smul.u32 2, %s16
      %p223 = scmp.lt.s32.totalorder %s222, 3
      %s224 = scalar_select %p223, %s222, 3
      %s225 = smul.addr %s224, 8
      %s226 = scalar_lea.vmem %s5, %s225
      %s227 = smul.u32 2, %s16
      %v229 = vld [vmem:[%s220] sm:$0xff]
      %v230 = vld [vmem:[%s220 + $0x8] sm:$0xff]
      %v231 = vpack.c.bf16 %v230, %v229
      %v232 = vld [vmem:[%s1] sm:$0xff]
      %v233 = vld [vmem:[%s1 + $0x8] sm:$0xff]
      %v234 = vld [vmem:[%s1 + $0x10] sm:$0xff]
      %v235 = vld [vmem:[%s1 + $0x18] sm:$0xff]
      %v236 = vld [vmem:[%s2] sm:$0x3]
      %v238 = vperm.slane %v236, 0
      %v239 = vperm.slane %v236, 1
      %v246 = vunpack.c.l.b16 %v232
      %v247 = vunpack.c.h.b16 %v232
      %v248 = vunpack.c.l.b16 %v233
      %v249 = vunpack.c.h.b16 %v233
      %v250 = vunpack.c.l.b16 %v234
      %v251 = vunpack.c.h.b16 %v234
      %v252 = vunpack.c.l.b16 %v235
      %v253 = vunpack.c.h.b16 %v235
      %v254 = vpack.c.b16 %v248, %v246
      %v255 = vpack.c.b16 %v249, %v247
      %v256 = vpack.c.b16 %v252, %v250
      %v257 = vpack.c.b16 %v253, %v251
      %vm262 = vcmask 261120
      %v264 = vsel %vm262, %v231, 0
      %266 = vmatpush.bf16.msra.mxu0 0
      %267 = vmatpush.bf16.msra.mxu0 0
      %268 = vmatpush.bf16.msra.mxu0 0
      %269 = vmatpush.bf16.msra.mxu0 0
      %270 = vmatpush.bf16.msra.mxu0 0
      %271 = vmatpush.bf16.msra.mxu0 0
      %272 = vmatpush.bf16.msra.mxu0 %v256
      %273 = vmatpush.bf16.msra.mxu0 %v254
      %274 = vmatmul.bf16.gmra.mxu0 %v264
      %v275 = vpop.f32.mrf.mxu0
      %v276 = vadd.f32 %v238, %v275
      %v277 = vpop.f32.mrf.mxu0
      %v278 = vadd.f32 %v238, %v277
      %279 = vdwg.mxu0
      %280 = vmatpush.bf16.msra.mxu0 0
      %281 = vmatpush.bf16.msra.mxu0 0
      %282 = vmatpush.bf16.msra.mxu0 0
      %283 = vmatpush.bf16.msra.mxu0 0
      %284 = vmatpush.bf16.msra.mxu0 0
      %285 = vmatpush.bf16.msra.mxu0 0
      %286 = vmatpush.bf16.msra.mxu0 %v257
      %287 = vmatpush.bf16.msra.mxu0 %v255
      %288 = vmatmul.bf16.gmra.mxu0 %v264
      %v289 = vpop.f32.mrf.mxu0
      %v290 = vadd.f32 %v239, %v289
      %v291 = vpop.f32.mrf.mxu0
      %v292 = vadd.f32 %v239, %v291
      %293 = vdwg.mxu0
      %v294 = vmax.f32 %v276, 0.0
      %v295 = vmax.f32 %v290, 0.0
      %v296 = vmax.f32 %v278, 0.0
      %v297 = vmax.f32 %v292, 0.0
      %v298 = vpack.c.bf16 %v296, %v294
      %v299 = vpack.c.bf16 %v297, %v295
      %v300 = vld [vmem:[%s3] sm:$0xf]
      %v301 = vld [vmem:[%s3 + $0x4] sm:$0xf]
      %v302 = vld [vmem:[%s3 + $0x8] sm:$0xf]
      %v303 = vld [vmem:[%s3 + $0xc] sm:$0xf]
      %v304 = vld [vmem:[%s3 + $0x10] sm:$0xf]
      %v305 = vld [vmem:[%s3 + $0x14] sm:$0xf]
      %v306 = vld [vmem:[%s3 + $0x18] sm:$0xf]
      %v307 = vld [vmem:[%s3 + $0x1c] sm:$0xf]
      %v308 = vld [vmem:[%s3 + $0x20] sm:$0xf]
      %v309 = vld [vmem:[%s3 + $0x24] sm:$0xf]
      %v310 = vld [vmem:[%s3 + $0x28] sm:$0xf]
      %v311 = vld [vmem:[%s3 + $0x2c] sm:$0xf]
      %v312 = vld [vmem:[%s3 + $0x30] sm:$0xf]
      %v313 = vld [vmem:[%s3 + $0x34] sm:$0xf]
      %v314 = vld [vmem:[%s3 + $0x38] sm:$0xf]
      %v315 = vld [vmem:[%s3 + $0x3c] sm:$0xf]
      %v316 = vld [vmem:[%s3 + $0x40] sm:$0xf]
      %v317 = vld [vmem:[%s3 + $0x44] sm:$0xf]
      %v318 = vld [vmem:[%s3 + $0x48] sm:$0xf]
      %v319 = vld [vmem:[%s3 + $0x4c] sm:$0xf]
      %v320 = vld [vmem:[%s3 + $0x50] sm:$0xf]
      %v321 = vld [vmem:[%s3 + $0x54] sm:$0xf]
      %v322 = vld [vmem:[%s3 + $0x58] sm:$0xf]
      %v323 = vld [vmem:[%s3 + $0x5c] sm:$0xf]
      %v324 = vld [vmem:[%s3 + $0x60] sm:$0xf]
      %v325 = vld [vmem:[%s3 + $0x64] sm:$0xf]
      %v326 = vld [vmem:[%s3 + $0x68] sm:$0xf]
      %v327 = vld [vmem:[%s3 + $0x6c] sm:$0xf]
      %v328 = vld [vmem:[%s3 + $0x70] sm:$0xf]
      %v329 = vld [vmem:[%s3 + $0x74] sm:$0xf]
      %v330 = vld [vmem:[%s3 + $0x78] sm:$0xf]
      %v331 = vld [vmem:[%s3 + $0x7c] sm:$0xf]
      %v332 = vld [vmem:[%s4] sm:$0x1]
      %v334 = vperm.slane %v332, 0
      %v368 = vunpack.c.l.b16 %v300
      %v369 = vunpack.c.l.b16 %v301
      %v370 = vunpack.c.l.b16 %v302
      %v371 = vunpack.c.l.b16 %v303
      %v372 = vunpack.c.l.b16 %v304
      %v373 = vunpack.c.l.b16 %v305
      %v374 = vunpack.c.l.b16 %v306
      %v375 = vunpack.c.l.b16 %v307
      %v376 = vunpack.c.l.b16 %v308
      %v377 = vunpack.c.l.b16 %v309
      %v378 = vunpack.c.l.b16 %v310
      %v379 = vunpack.c.l.b16 %v311
      %v380 = vunpack.c.l.b16 %v312
      %v381 = vunpack.c.l.b16 %v313
      %v382 = vunpack.c.l.b16 %v314
      %v383 = vunpack.c.l.b16 %v315
      %v384 = vunpack.c.l.b16 %v316
      %v385 = vunpack.c.l.b16 %v317
      %v386 = vunpack.c.l.b16 %v318
      %v387 = vunpack.c.l.b16 %v319
      %v388 = vunpack.c.l.b16 %v320
      %v389 = vunpack.c.l.b16 %v321
      %v390 = vunpack.c.l.b16 %v322
      %v391 = vunpack.c.l.b16 %v323
      %v392 = vunpack.c.l.b16 %v324
      %v393 = vunpack.c.l.b16 %v325
      %v394 = vunpack.c.l.b16 %v326
      %v395 = vunpack.c.l.b16 %v327
      %v396 = vunpack.c.l.b16 %v328
      %v397 = vunpack.c.l.b16 %v329
      %v398 = vunpack.c.l.b16 %v330
      %v399 = vunpack.c.l.b16 %v331
      %v400 = vpack.c.b16 %v369, %v368
      %v401 = vpack.c.b16 %v371, %v370
      %v402 = vpack.c.b16 %v373, %v372
      %v403 = vpack.c.b16 %v375, %v374
      %v404 = vpack.c.b16 %v377, %v376
      %v405 = vpack.c.b16 %v379, %v378
      %v406 = vpack.c.b16 %v381, %v380
      %v407 = vpack.c.b16 %v383, %v382
      %v408 = vpack.c.b16 %v385, %v384
      %v409 = vpack.c.b16 %v387, %v386
      %v410 = vpack.c.b16 %v389, %v388
      %v411 = vpack.c.b16 %v391, %v390
      %v412 = vpack.c.b16 %v393, %v392
      %v413 = vpack.c.b16 %v395, %v394
      %v414 = vpack.c.b16 %v397, %v396
      %v415 = vpack.c.b16 %v399, %v398
      %432 = vmatpush.bf16.msra.mxu0 %v407
      %433 = vmatpush.bf16.msra.mxu0 %v406
      %434 = vmatpush.bf16.msra.mxu0 %v405
      %435 = vmatpush.bf16.msra.mxu0 %v404
      %436 = vmatpush.bf16.msra.mxu0 %v403
      %437 = vmatpush.bf16.msra.mxu0 %v402
      %438 = vmatpush.bf16.msra.mxu0 %v401
      %439 = vmatpush.bf16.msra.mxu0 %v400
      %440 = vmatmul.bf16.gmra.mxu0 %v298
      %v441 = vpop.f32.mrf.mxu0
      %v442 = vadd.f32 %v334, %v441
      %v443 = vpop.f32.mrf.mxu0
      %v444 = vadd.f32 %v334, %v443
      %445 = vdwg.mxu0
      %446 = vmatpush.bf16.msra.mxu0 %v415
      %447 = vmatpush.bf16.msra.mxu0 %v414
      %448 = vmatpush.bf16.msra.mxu0 %v413
      %449 = vmatpush.bf16.msra.mxu0 %v412
      %450 = vmatpush.bf16.msra.mxu0 %v411
      %451 = vmatpush.bf16.msra.mxu0 %v410
      %452 = vmatpush.bf16.msra.mxu0 %v409
      %453 = vmatpush.bf16.msra.mxu0 %v408
      %454 = vmatmul.bf16.gmra.mxu0 %v299
      %v455 = vpop.f32.mrf.mxu0
      %v456 = vadd.f32 %v442, %v455
      %v457 = vpop.f32.mrf.mxu0
      %v458 = vadd.f32 %v444, %v457
      %459 = vdwg.mxu0
      %vm460 = vcmask 31744
      %461 = vst.msk [vmem:[%s226] sm:$0xff] %vm460, %v456
      %462 = vst.msk [vmem:[%s226 + $0x8] sm:$0xff] %vm460, %v458
      %s463 = smul.u32 2, %s16
      %p464 = scmp.lt.s32.totalorder %s463, 3
      %s465 = scalar_select %p464, %s463, 3
      %s466 = smul.addr %s465, 8
      %s467 = scalar_lea.vmem %s5, %s466
      // Predicated region
      $region41: #{_mlp_layer_call.1} parent=39 // pred_check
        %p468 = pneg %p144
      $region42: #{_mlp_layer_call.1} parent=39 // pred_check_branch
        %470 = sbr.rel (%p468) target = $region44
      $region43: #{_mlp_layer_call.1} parent=39 // pred_region
        %s471 = smul.u32 2, %s16
      $region44: #{_mlp_layer_call.1} parent=39 // pred_fallthru
        _
    $region40: #{_mlp_layer_call.1} parent=5 // pred_fallthru
      _
    %p472 = scmp.le.s32.totalorder 2, %s11
    // Predicated region
    $region45: #{_mlp_layer_call.1} parent=5 // pred_check
      %p473 = pneg %p472
    $region46: #{_mlp_layer_call.1} parent=5 // pred_check_branch
      %475 = sbr.rel (%p473) target = $region48
    $region47: #{_mlp_layer_call.1} parent=5 // pred_region
      %s476 = ssub.s32 %s11, 2
      // Predicated region
      $region49: #{_mlp_layer_call.1} parent=47 // pred_check
        %p477 = pneg %p150
      $region50: #{_mlp_layer_call.1} parent=47 // pred_check_branch
        %479 = sbr.rel (%p477) target = $region52
      $region51: #{_mlp_layer_call.1} parent=47 // pred_region
        %s480 = smul.u32 2, %s17
        %p481 = scmp.lt.s32.totalorder %s480, 3
        %s482 = scalar_select %p481, %s480, 3
        %s483 = smul.addr %s482, 8
        %s484 = scalar_lea.vmem %s5, %s483
      $region52: #{_mlp_layer_call.1} parent=47 // pred_fallthru
        _
    $region48: #{_mlp_layer_call.1} parent=5 // pred_fallthru
      _
  $region6: #{_mlp_layer_call.1} parent=0 // loop_footer
    %s15 = sadd.s32 1, %s11
  $region7: #{_mlp_layer_call.1} parent=0 // loop_footer_branch
    %10 = sbr.rel target = $region3
  $region8: #{_mlp_layer_call.1} parent=0 // loop_exit
    _

// kernel: _mlp_layer_call.1
$region0: #{_mlp_layer_call.1}
  #allocation0 [shape = 'u32[]', space=smem, size = 0x4, offset = 0x4, fixed_abs, tag = 'smem constant byte address 0x4 - core index']
  #allocation1 [shape = 'u32[72,128]{1,0:T(1,128)}', space=vmem, size = 0x9000, scoped, tag = 'internal scratch']
  %s0 = inlined_call_operand.vmem [shape: f32[32,32], index: 0, kind: input, shape index: {}]
  %s1 = inlined_call_operand.vmem [shape: bf16[32,256], index: 1, kind: input, shape index: {}]
  %s2 = inlined_call_operand.vmem [shape: f32[1,256], index: 2, kind: input, shape index: {}]
  %s3 = inlined_call_operand.vmem [shape: bf16[256,4], index: 3, kind: input, shape index: {}]
  %s4 = inlined_call_operand.vmem [shape: f32[1,4], index: 4, kind: input, shape index: {}]
  %s5 = inlined_call_operand.vmem [shape: f32[32,4], index: 5, kind: output, shape index: {}]
  %s6 = sld [smem:[#allocation0]]
  $region53: #{_mlp_layer_call.1} parent=0
    _
  %s8 = ssub.s32 1, %s6
  %s9 = scalar_select 0, %s8, %s6
  loop: start=0, step=1, limit=4
  $region2: #{_mlp_layer_call.1} parent=0 // loop_pre_header
    _
  $region3: #{_mlp_layer_call.1} parent=0 // loop_header
    %s11 = sphi 0, %s15
    %p12 = scmp.ge.s32.totalorder %s11, 4
    %s21 = sphi 0, %s23
    %s24 = sphi 0, %s21
    %s25 = sphi 0, %s24
    %s41 = sphi 0, %s25
    %s45 = sphi 0, %s45
    %s47 = sphi 0, %s45
    %s48 = sphi 0, %s47
    %s62 = sphi 0, %s48
    %s66 = sphi 0, %s66
    %s68 = sphi 0, %s66
    %s69 = sphi 0, %s68
    %s83 = sphi 0, %s69
    %s87 = sphi 0, %s87
    %s89 = sphi 0, %s87
    %s90 = sphi 0, %s89
    %s104 = sphi 0, %s90
    %s108 = sphi 0, %s108
    %s110 = sphi 0, %s108
    %s111 = sphi 0, %s110
    %s125 = sphi 0, %s111
    %s131 = sphi 0, %s133
    %s134 = sphi 0, %s131
    %s135 = sphi 0, %s134
    %s151 = sphi 0, %s135
  $region4: #{_mlp_layer_call.1} parent=0 // loop_header_branch
    %14 = sbr.rel (%p12) target = $region8
  $region5: #{_mlp_layer_call.1} parent=0 // loop_body
    %s16 = ssub.s32 %s11, 1
    %s17 = ssub.s32 %s11, 2
    %s18 = sadd.s32 %s11, 1
    %s19 = ssub.s32 %s11, %s18
    %p20 = scmp.eq.s32.totalorder %s19, 0
    %s22 = sadd.s32 %s21, 1
    %s23 = scalar_select %p20, %s21, %s22
    %p26 = pneg %p20
    %p27 = scmp.eq.s32.totalorder %s11, 1
    %p28 = por %p26, %p27
    %p29 = scmp.ne.s32.totalorder %s21, %s24
    %p30 = scmp.eq.s32.totalorder %s11, 0
    %p31 = por %p29, %p30
    %p32 = scmp.ne.s32.totalorder %s21, %s24
    %p33 = scmp.eq.s32.totalorder %s16, 1
    %p34 = por %p32, %p33
    %p35 = scmp.ne.s32.totalorder %s24, %s25
    %p36 = scmp.eq.s32.totalorder %s16, 0
    %p37 = por %p35, %p36
    %p38 = scmp.ne.s32.totalorder %s24, %s25
    %p39 = scmp.eq.s32.totalorder %s17, 1
    %p40 = por %p38, %p39
    %p42 = scmp.ne.s32.totalorder %s25, %s41
    %p43 = scmp.eq.s32.totalorder %s17, 0
    %p44 = por %p42, %p43
    %s46 = sadd.s32 %s45, 1
    %p49 = scmp.eq.s32.totalorder %s11, 1
    %p50 = scmp.ne.s32.totalorder %s45, %s47
    %p51 = scmp.eq.s32.totalorder %s11, 0
    %p52 = por %p50, %p51
    %p53 = scmp.ne.s32.totalorder %s45, %s47
    %p54 = scmp.eq.s32.totalorder %s16, 1
    %p55 = por %p53, %p54
    %p56 = scmp.ne.s32.totalorder %s47, %s48
    %p57 = scmp.eq.s32.totalorder %s16, 0
    %p58 = por %p56, %p57
    %p59 = scmp.ne.s32.totalorder %s47, %s48
    %p60 = scmp.eq.s32.totalorder %s17, 1
    %p61 = por %p59, %p60
    %p63 = scmp.ne.s32.totalorder %s48, %s62
    %p64 = scmp.eq.s32.totalorder %s17, 0
    %p65 = por %p63, %p64
    %s67 = sadd.s32 %s66, 1
    %p70 = scmp.eq.s32.totalorder %s11, 1
    %p71 = scmp.ne.s32.totalorder %s66, %s68
    %p72 = scmp.eq.s32.totalorder %s11, 0
    %p73 = por %p71, %p72
    %p74 = scmp.ne.s32.totalorder %s66, %s68
    %p75 = scmp.eq.s32.totalorder %s16, 1
    %p76 = por %p74, %p75
    %p77 = scmp.ne.s32.totalorder %s68, %s69
    %p78 = scmp.eq.s32.totalorder %s16, 0
    %p79 = por %p77, %p78
    %p80 = scmp.ne.s32.totalorder %s68, %s69
    %p81 = scmp.eq.s32.totalorder %s17, 1
    %p82 = por %p80, %p81
    %p84 = scmp.ne.s32.totalorder %s69, %s83
    %p85 = scmp.eq.s32.totalorder %s17, 0
    %p86 = por %p84, %p85
    %s88 = sadd.s32 %s87, 1
    %p91 = scmp.eq.s32.totalorder %s11, 1
    %p92 = scmp.ne.s32.totalorder %s87, %s89
    %p93 = scmp.eq.s32.totalorder %s11, 0
    %p94 = por %p92, %p93
    %p95 = scmp.ne.s32.totalorder %s87, %s89
    %p96 = scmp.eq.s32.totalorder %s16, 1
    %p97 = por %p95, %p96
    %p98 = scmp.ne.s32.totalorder %s89, %s90
    %p99 = scmp.eq.s32.totalorder %s16, 0
    %p100 = por %p98, %p99
    %p101 = scmp.ne.s32.totalorder %s89, %s90
    %p102 = scmp.eq.s32.totalorder %s17, 1
    %p103 = por %p101, %p102
    %p105 = scmp.ne.s32.totalorder %s90, %s104
    %p106 = scmp.eq.s32.totalorder %s17, 0
    %p107 = por %p105, %p106
    %s109 = sadd.s32 %s108, 1
    %p112 = scmp.eq.s32.totalorder %s11, 1
    %p113 = scmp.ne.s32.totalorder %s108, %s110
    %p114 = scmp.eq.s32.totalorder %s11, 0
    %p115 = por %p113, %p114
    %p116 = scmp.ne.s32.totalorder %s108, %s110
    %p117 = scmp.eq.s32.totalorder %s16, 1
    %p118 = por %p116, %p117
    %p119 = scmp.ne.s32.totalorder %s110, %s111
    %p120 = scmp.eq.s32.totalorder %s16, 0
    %p121 = por %p119, %p120
    %p122 = scmp.ne.s32.totalorder %s110, %s111
    %p123 = scmp.eq.s32.totalorder %s17, 1
    %p124 = por %p122, %p123
    %p126 = scmp.ne.s32.totalorder %s111, %s125
    %p127 = scmp.eq.s32.totalorder %s17, 0
    %p128 = por %p126, %p127
    %s129 = ssub.s32 %s11, %s18
    %p130 = scmp.eq.s32.totalorder %s129, 0
    %s132 = sadd.s32 %s131, 1
    %s133 = scalar_select %p130, %s131, %s132
    %p136 = pneg %p130
    %p137 = scmp.eq.s32.totalorder %s11, 1
    %p138 = por %p136, %p137
    %p139 = scmp.ne.s32.totalorder %s131, %s134
    %p140 = scmp.eq.s32.totalorder %s11, 0
    %p141 = por %p139, %p140
    %p142 = scmp.ne.s32.totalorder %s131, %s134
    %p143 = scmp.eq.s32.totalorder %s16, 1
    %p144 = por %p142, %p143
    %p145 = scmp.ne.s32.totalorder %s134, %s135
    %p146 = scmp.eq.s32.totalorder %s16, 0
    %p147 = por %p145, %p146
    %p148 = scmp.ne.s32.totalorder %s134, %s135
    %p149 = scmp.eq.s32.totalorder %s17, 1
    %p150 = por %p148, %p149
    %p152 = scmp.ne.s32.totalorder %s135, %s151
    %p153 = scmp.eq.s32.totalorder %s17, 0
    %p154 = por %p152, %p153
    %p155 = scmp.le.s32.totalorder 1, %s11
    %p156 = scmp.lt.s32.totalorder %s11, 3
    %p157 = pnand %p155, %p156
    %p158 = pneg %p157
    // Predicated region
    $region9: #{_mlp_layer_call.1} parent=5 // pred_check
      _
    $region10: #{_mlp_layer_call.1} parent=5 // pred_check_branch
      %160 = sbr.rel (%p157) target = $region12
    $region11: #{_mlp_layer_call.1} parent=5 // pred_region
      %s161 = ssub.s32 %s11, 1
      // Predicated region
      $region13: #{_mlp_layer_call.1} parent=11 // pred_check
        %p162 = pneg %p58
      $region14: #{_mlp_layer_call.1} parent=11 // pred_check_branch
        %164 = sbr.rel (%p162) target = $region16
      $region15: #{_mlp_layer_call.1} parent=11 // pred_region
        _
      $region16: #{_mlp_layer_call.1} parent=11 // pred_fallthru
        _
      // Predicated region
      $region17: #{_mlp_layer_call.1} parent=11 // pred_check
        %p165 = pneg %p79
      $region18: #{_mlp_layer_call.1} parent=11 // pred_check_branch
        %167 = sbr.rel (%p165) target = $region20
      $region19: #{_mlp_layer_call.1} parent=11 // pred_region
        _
      $region20: #{_mlp_layer_call.1} parent=11 // pred_fallthru
        _
      // Predicated region
      $region21: #{_mlp_layer_call.1} parent=11 // pred_check
        %p168 = pneg %p100
      $region22: #{_mlp_layer_call.1} parent=11 // pred_check_branch
        %170 = sbr.rel (%p168) target = $region24
      $region23: #{_mlp_layer_call.1} parent=11 // pred_region
        _
      $region24: #{_mlp_layer_call.1} parent=11 // pred_fallthru
        _
      // Predicated region
      $region25: #{_mlp_layer_call.1} parent=11 // pred_check
        %p171 = pneg %p121
      $region26: #{_mlp_layer_call.1} parent=11 // pred_check_branch
        %173 = sbr.rel (%p171) target = $region28
      $region27: #{_mlp_layer_call.1} parent=11 // pred_region
        _
      $region28: #{_mlp_layer_call.1} parent=11 // pred_fallthru
        _
    $region12: #{_mlp_layer_call.1} parent=5 // pred_fallthru
      _
    %p174 = scmp.lt.s32.totalorder %s11, 2
    // Predicated region
    $region29: #{_mlp_layer_call.1} parent=5 // pred_check
      %p175 = pneg %p174
    $region30: #{_mlp_layer_call.1} parent=5 // pred_check_branch
      %177 = sbr.rel (%p175) target = $region32
    $region31: #{_mlp_layer_call.1} parent=5 // pred_region
      // Predicated region
      $region33: #{_mlp_layer_call.1} parent=31 // pred_check
        %p178 = pneg %p31
      $region34: #{_mlp_layer_call.1} parent=31 // pred_check_branch
        %180 = sbr.rel (%p178) target = $region36
      $region35: #{_mlp_layer_call.1} parent=31 // pred_region
        %s181 = smul.u32 2, %s11
        %p182 = scmp.lt.s32.totalorder %s181, 3
        %s183 = scalar_select %p182, %s181, 3
        %s184 = smul.addr %s183, 8
        %s185 = scalar_lea.vmem %s0, %s184
        %s186 = smul.u32 2, %s11
      $region36: #{_mlp_layer_call.1} parent=31 // pred_fallthru
        _
    $region32: #{_mlp_layer_call.1} parent=5 // pred_fallthru
      _
    %p187 = scmp.le.s32.totalorder 1, %s11
    %p188 = scmp.lt.s32.totalorder %s11, 3
    %p189 = pnand %p187, %p188
    %p190 = pneg %p189
    // Predicated region
    $region37: #{_mlp_layer_call.1} parent=5 // pred_check
      _
    $region38: #{_mlp_layer_call.1} parent=5 // pred_check_branch
      %192 = sbr.rel (%p189) target = $region40
    $region39: #{_mlp_layer_call.1} parent=5 // pred_region
      %s193 = ssub.s32 %s11, 1
      %s194 = smul.u32 2, %s16
      %p195 = scmp.lt.s32.totalorder %s194, 3
      %s196 = scalar_select %p195, %s194, 3
      %s197 = smul.addr %s196, 8
      %s198 = scalar_lea.vmem %s0, %s197
      %p199 = pneg %p37
      %p200 = pneg %p34
      %p201 = pneg %p58
      %p202 = pneg %p55
      %p203 = pneg %p79
      %p204 = pneg %p76
      %p205 = pneg %p100
      %p206 = pneg %p97
      %p207 = pneg %p121
      %p208 = pneg %p118
      %p209 = pneg %p147
      %p210 = pneg %p144
      %s211 = smul.u32 2, %s16
      %p212 = scmp.lt.s32.totalorder %s211, 3
      %s213 = scalar_select %p212, %s211, 3
      %s214 = smul.addr %s213, 8
      %s215 = scalar_lea.vmem %s5, %s214
      %s216 = smul.u32 2, %s16
      %p217 = scmp.lt.s32.totalorder %s216, 3
      %s218 = scalar_select %p217, %s216, 3
      %s219 = smul.addr %s218, 8
      %s220 = scalar_lea.vmem %s0, %s219
      %s221 = smul.u32 2, %s16
      %s222 = smul.u32 2, %s16
      %p223 = scmp.lt.s32.totalorder %s222, 3
      %s224 = scalar_select %p223, %s222, 3
      %s225 = smul.addr %s224, 8
      %s226 = scalar_lea.vmem %s5, %s225
      %s227 = smul.u32 2, %s16
      %v229 = vld [vmem:[%s220] sm:$0xff]
      %v230 = vld [vmem:[%s220 + $0x8] sm:$0xff]
      %v231 = vpack.c.bf16 %v230, %v229
      %v232 = vld [vmem:[%s1] sm:$0xff]
      %v233 = vld [vmem:[%s1 + $0x8] sm:$0xff]
      %v234 = vld [vmem:[%s1 + $0x10] sm:$0xff]
      %v235 = vld [vmem:[%s1 + $0x18] sm:$0xff]
      %v236 = vld [vmem:[%s2] sm:$0x3]
      %v238 = vperm.slane %v236, 0
      %v239 = vperm.slane %v236, 1
      %v246 = vunpack.c.l.b16 %v232
      %v247 = vunpack.c.h.b16 %v232
      %v248 = vunpack.c.l.b16 %v233
      %v249 = vunpack.c.h.b16 %v233
      %v250 = vunpack.c.l.b16 %v234
      %v251 = vunpack.c.h.b16 %v234
      %v252 = vunpack.c.l.b16 %v235
      %v253 = vunpack.c.h.b16 %v235
      %v254 = vpack.c.b16 %v248, %v246
      %v255 = vpack.c.b16 %v249, %v247
      %v256 = vpack.c.b16 %v252, %v250
      %v257 = vpack.c.b16 %v253, %v251
      %vm262 = vcmask 261120
      %v264 = vsel %vm262, %v231, 0
      %266 = vmatpush.bf16.msra.mxu0 0
      %267 = vmatpush.bf16.msra.mxu0 0
      %268 = vmatpush.bf16.msra.mxu0 0
      %269 = vmatpush.bf16.msra.mxu0 0
      %270 = vmatpush.bf16.msra.mxu0 0
      %271 = vmatpush.bf16.msra.mxu0 0
      %272 = vmatpush.bf16.msra.mxu0 %v256
      %273 = vmatpush.bf16.msra.mxu0 %v254
      %274 = vmatmul.bf16.gmra.mxu0 %v264
      %v275 = vpop.f32.mrf.mxu0
      %v276 = vadd.f32 %v238, %v275
      %v277 = vpop.f32.mrf.mxu0
      %v278 = vadd.f32 %v238, %v277
      %279 = vdwg.mxu0
      %280 = vmatpush.bf16.msra.mxu0 0
      %281 = vmatpush.bf16.msra.mxu0 0
      %282 = vmatpush.bf16.msra.mxu0 0
      %283 = vmatpush.bf16.msra.mxu0 0
      %284 = vmatpush.bf16.msra.mxu0 0
      %285 = vmatpush.bf16.msra.mxu0 0
      %286 = vmatpush.bf16.msra.mxu0 %v257
      %287 = vmatpush.bf16.msra.mxu0 %v255
      %288 = vmatmul.bf16.gmra.mxu0 %v264
      %v289 = vpop.f32.mrf.mxu0
      %v290 = vadd.f32 %v239, %v289
      %v291 = vpop.f32.mrf.mxu0
      %v292 = vadd.f32 %v239, %v291
      %293 = vdwg.mxu0
      %v294 = vmax.f32 %v276, 0.0
      %v295 = vmax.f32 %v290, 0.0
      %v296 = vmax.f32 %v278, 0.0
      %v297 = vmax.f32 %v292, 0.0
      %v298 = vpack.c.bf16 %v296, %v294
      %v299 = vpack.c.bf16 %v297, %v295
      %v300 = vld [vmem:[%s3] sm:$0xf]
      %v301 = vld [vmem:[%s3 + $0x4] sm:$0xf]
      %v302 = vld [vmem:[%s3 + $0x8] sm:$0xf]
      %v303 = vld [vmem:[%s3 + $0xc] sm:$0xf]
      %v304 = vld [vmem:[%s3 + $0x10] sm:$0xf]
      %v305 = vld [vmem:[%s3 + $0x14] sm:$0xf]
      %v306 = vld [vmem:[%s3 + $0x18] sm:$0xf]
      %v307 = vld [vmem:[%s3 + $0x1c] sm:$0xf]
      %v308 = vld [vmem:[%s3 + $0x20] sm:$0xf]
      %v309 = vld [vmem:[%s3 + $0x24] sm:$0xf]
      %v310 = vld [vmem:[%s3 + $0x28] sm:$0xf]
      %v311 = vld [vmem:[%s3 + $0x2c] sm:$0xf]
      %v312 = vld [vmem:[%s3 + $0x30] sm:$0xf]
      %v313 = vld [vmem:[%s3 + $0x34] sm:$0xf]
      %v314 = vld [vmem:[%s3 + $0x38] sm:$0xf]
      %v315 = vld [vmem:[%s3 + $0x3c] sm:$0xf]
      %v316 = vld [vmem:[%s3 + $0x40] sm:$0xf]
      %v317 = vld [vmem:[%s3 + $0x44] sm:$0xf]
      %v318 = vld [vmem:[%s3 + $0x48] sm:$0xf]
      %v319 = vld [vmem:[%s3 + $0x4c] sm:$0xf]
      %v320 = vld [vmem:[%s3 + $0x50] sm:$0xf]
      %v321 = vld [vmem:[%s3 + $0x54] sm:$0xf]
      %v322 = vld [vmem:[%s3 + $0x58] sm:$0xf]
      %v323 = vld [vmem:[%s3 + $0x5c] sm:$0xf]
      %v324 = vld [vmem:[%s3 + $0x60] sm:$0xf]
      %v325 = vld [vmem:[%s3 + $0x64] sm:$0xf]
      %v326 = vld [vmem:[%s3 + $0x68] sm:$0xf]
      %v327 = vld [vmem:[%s3 + $0x6c] sm:$0xf]
      %v328 = vld [vmem:[%s3 + $0x70] sm:$0xf]
      %v329 = vld [vmem:[%s3 + $0x74] sm:$0xf]
      %v330 = vld [vmem:[%s3 + $0x78] sm:$0xf]
      %v331 = vld [vmem:[%s3 + $0x7c] sm:$0xf]
      %v332 = vld [vmem:[%s4] sm:$0x1]
      %v334 = vperm.slane %v332, 0
      %v368 = vunpack.c.l.b16 %v300
      %v369 = vunpack.c.l.b16 %v301
      %v370 = vunpack.c.l.b16 %v302
      %v371 = vunpack.c.l.b16 %v303
      %v372 = vunpack.c.l.b16 %v304
      %v373 = vunpack.c.l.b16 %v305
      %v374 = vunpack.c.l.b16 %v306
      %v375 = vunpack.c.l.b16 %v307
      %v376 = vunpack.c.l.b16 %v308
      %v377 = vunpack.c.l.b16 %v309
      %v378 = vunpack.c.l.b16 %v310
      %v379 = vunpack.c.l.b16 %v311
      %v380 = vunpack.c.l.b16 %v312
      %v381 = vunpack.c.l.b16 %v313
      %v382 = vunpack.c.l.b16 %v314
      %v383 = vunpack.c.l.b16 %v315
      %v384 = vunpack.c.l.b16 %v316
      %v385 = vunpack.c.l.b16 %v317
      %v386 = vunpack.c.l.b16 %v318
      %v387 = vunpack.c.l.b16 %v319
      %v388 = vunpack.c.l.b16 %v320
      %v389 = vunpack.c.l.b16 %v321
      %v390 = vunpack.c.l.b16 %v322
      %v391 = vunpack.c.l.b16 %v323
      %v392 = vunpack.c.l.b16 %v324
      %v393 = vunpack.c.l.b16 %v325
      %v394 = vunpack.c.l.b16 %v326
      %v395 = vunpack.c.l.b16 %v327
      %v396 = vunpack.c.l.b16 %v328
      %v397 = vunpack.c.l.b16 %v329
      %v398 = vunpack.c.l.b16 %v330
      %v399 = vunpack.c.l.b16 %v331
      %v400 = vpack.c.b16 %v369, %v368
      %v401 = vpack.c.b16 %v371, %v370
      %v402 = vpack.c.b16 %v373, %v372
      %v403 = vpack.c.b16 %v375, %v374
      %v404 = vpack.c.b16 %v377, %v376
      %v405 = vpack.c.b16 %v379, %v378
      %v406 = vpack.c.b16 %v381, %v380
      %v407 = vpack.c.b16 %v383, %v382
      %v408 = vpack.c.b16 %v385, %v384
      %v409 = vpack.c.b16 %v387, %v386
      %v410 = vpack.c.b16 %v389, %v388
      %v411 = vpack.c.b16 %v391, %v390
      %v412 = vpack.c.b16 %v393, %v392
      %v413 = vpack.c.b16 %v395, %v394
      %v414 = vpack.c.b16 %v397, %v396
      %v415 = vpack.c.b16 %v399, %v398
      %432 = vmatpush.bf16.msra.mxu0 %v407
      %433 = vmatpush.bf16.msra.mxu0 %v406
      %434 = vmatpush.bf16.msra.mxu0 %v405
      %435 = vmatpush.bf16.msra.mxu0 %v404
      %436 = vmatpush.bf16.msra.mxu0 %v403
      %437 = vmatpush.bf16.msra.mxu0 %v402
      %438 = vmatpush.bf16.msra.mxu0 %v401
      %439 = vmatpush.bf16.msra.mxu0 %v400
      %440 = vmatmul.bf16.gmra.mxu0 %v298
      %v441 = vpop.f32.mrf.mxu0
      %v442 = vadd.f32 %v334, %v441
      %v443 = vpop.f32.mrf.mxu0
      %v444 = vadd.f32 %v334, %v443
      %445 = vdwg.mxu0
      %446 = vmatpush.bf16.msra.mxu0 %v415
      %447 = vmatpush.bf16.msra.mxu0 %v414
      %448 = vmatpush.bf16.msra.mxu0 %v413
      %449 = vmatpush.bf16.msra.mxu0 %v412
      %450 = vmatpush.bf16.msra.mxu0 %v411
      %451 = vmatpush.bf16.msra.mxu0 %v410
      %452 = vmatpush.bf16.msra.mxu0 %v409
      %453 = vmatpush.bf16.msra.mxu0 %v408
      %454 = vmatmul.bf16.gmra.mxu0 %v299
      %v455 = vpop.f32.mrf.mxu0
      %v456 = vadd.f32 %v442, %v455
      %v457 = vpop.f32.mrf.mxu0
      %v458 = vadd.f32 %v444, %v457
      %459 = vdwg.mxu0
      %vm460 = vcmask 31744
      %461 = vst.msk [vmem:[%s226] sm:$0xff] %vm460, %v456
      %462 = vst.msk [vmem:[%s226 + $0x8] sm:$0xff] %vm460, %v458
      %s463 = smul.u32 2, %s16
      %p464 = scmp.lt.s32.totalorder %s463, 3
      %s465 = scalar_select %p464, %s463, 3
      %s466 = smul.addr %s465, 8
      %s467 = scalar_lea.vmem %s5, %s466
      // Predicated region
      $region41: #{_mlp_layer_call.1} parent=39 // pred_check
        %p468 = pneg %p144
      $region42: #{_mlp_layer_call.1} parent=39 // pred_check_branch
        %470 = sbr.rel (%p468) target = $region44
      $region43: #{_mlp_layer_call.1} parent=39 // pred_region
        %s471 = smul.u32 2, %s16
      $region44: #{_mlp_layer_call.1} parent=39 // pred_fallthru
        _
    $region40: #{_mlp_layer_call.1} parent=5 // pred_fallthru
      _
    %p472 = scmp.le.s32.totalorder 2, %s11
    // Predicated region
    $region45: #{_mlp_layer_call.1} parent=5 // pred_check
      %p473 = pneg %p472
    $region46: #{_mlp_layer_call.1} parent=5 // pred_check_branch
      %475 = sbr.rel (%p473) target = $region48
    $region47: #{_mlp_layer_call.1} parent=5 // pred_region
      %s476 = ssub.s32 %s11, 2
      // Predicated region
      $region49: #{_mlp_layer_call.1} parent=47 // pred_check
        %p477 = pneg %p150
      $region50: #{_mlp_layer_call.1} parent=47 // pred_check_branch
        %479 = sbr.rel (%p477) target = $region52
      $region51: #{_mlp_layer_call.1} parent=47 // pred_region
        %s480 = smul.u32 2, %s17
        %p481 = scmp.lt.s32.totalorder %s480, 3
        %s482 = scalar_select %p481, %s480, 3
        %s483 = smul.addr %s482, 8
        %s484 = scalar_lea.vmem %s5, %s483
      $region52: #{_mlp_layer_call.1} parent=47 // pred_fallthru
        _
    $region48: #{_mlp_layer_call.1} parent=5 // pred_fallthru
      _
  $region6: #{_mlp_layer_call.1} parent=0 // loop_footer
    %s15 = sadd.s32 1, %s11
  $region7: #{_mlp_layer_call.1} parent=0 // loop_footer_branch
    %10 = sbr.rel target = $region3
  $region8: #{_mlp_layer_call.1} parent=0 // loop_exit
    _

</llo_original>
